<compile_context>
chip_gen: v6e
topology: v6e:2x2x1
jax: 0.10.0
libtpu: 0.0.40
codegen_flags: <defaults>
</compile_context>

<pallas_src>
import functools

import jax
import jax.numpy as jnp
from jax.experimental import pallas as pl
from jax.experimental.pallas import tpu as pltpu

LANE = 128  # vreg lane width; MXU-friendly alignment on all generations.


def _round_up(n: int, m: int) -> int:
    return ((n + m - 1) // m) * m


def shallow_nn_kernel(x_ref, w1_ref, b1_ref, w2_ref, b2_ref, o_ref):
    # layer1: x @ W1 (MXU, f32 accumulation); bias add + tanh in f32 (VPU/EUP).
    h = jnp.dot(x_ref[...], w1_ref[...], preferred_element_type=jnp.float32)
    h = jnp.tanh(h + b1_ref[...])                 # b1 is [1, width_p] -> broadcast
    # layer2: cast activation to the matmul operand dtype, accumulate in f32.
    out = jnp.dot(h.astype(w2_ref.dtype), w2_ref[...],
                  preferred_element_type=jnp.float32)
    o_ref[...] = (out + b2_ref[...]).astype(o_ref.dtype)


@functools.partial(jax.jit, static_argnames=("compute_dtype", "block_batch"))
def shallow_nn(x, w1, b1, w2, b2, *, compute_dtype=jnp.float32, block_batch=512):
    """out = tanh(x @ w1 + b1) @ w2 + b2, evaluated in a Pallas TPU kernel."""
    batch, in_dim = x.shape
    width = w1.shape[1]
    out_dim = w2.shape[1]

    # ---- lane/MXU-aligned padded feature dims ----
    in_p = _round_up(in_dim, LANE)
    width_p = _round_up(width, LANE)
    out_p = _round_up(out_dim, LANE)

    cdt = jnp.dtype(compute_dtype)
    odt = jnp.dtype(x.dtype)
    c_item = cdt.itemsize
    o_item = odt.itemsize

    # Resident weights/biases in VMEM (full-array blocks across the grid).
    weight_bytes = (in_p * width_p + width_p * out_p) * c_item + (width_p + out_p) * 4

    # ---- batch tile size, bounded by a VMEM budget safe on v5e/v6e/v7x ----
    budget = int(0.7 * (32 << 20))
    tm = min(block_batch, _round_up(batch, 8))
    while True:
        tile_bytes = 2 * tm * (in_p * c_item + out_p * o_item)   # double-buffered x/out
        live_f32 = tm * (width_p + out_p) * 4                    # in-kernel f32 temps
        if weight_bytes + tile_bytes + live_f32 <= budget or tm <= 8:
            break
        tm = max(8, _round_up(tm // 2, 8))

    need = weight_bytes + 2 * tm * (in_p * c_item + out_p * o_item) + tm * (width_p + out_p) * 4
    vmem_limit = int(min(32 << 20, max(8 << 20, 2 * need)))

    batch_p = _round_up(batch, tm)
    grid = (batch_p // tm,)

    # ---- zero-pad operands (exact: padded rows/cols contribute nothing) ----
    xp = jnp.pad(x, ((0, batch_p - batch), (0, in_p - in_dim))).astype(cdt)
    w1p = jnp.pad(w1, ((0, in_p - in_dim), (0, width_p - width))).astype(cdt)
    w2p = jnp.pad(w2, ((0, width_p - width), (0, out_p - out_dim))).astype(cdt)
    b1p = jnp.pad(b1.reshape(1, -1), ((0, 0), (0, width_p - width))).astype(jnp.float32)
    b2p = jnp.pad(b2.reshape(1, -1), ((0, 0), (0, out_p - out_dim))).astype(jnp.float32)

    cost = pl.CostEstimate(
        flops=2 * batch_p * (in_p * width_p + width_p * out_p),
        transcendentals=batch_p * width_p,
        bytes_accessed=(xp.size * c_item + w1p.size * c_item + w2p.size * c_item
                        + b1p.size * 4 + b2p.size * 4 + batch_p * out_p * o_item),
    )

    out_padded = pl.pallas_call(
        shallow_nn_kernel,
        out_shape=jax.ShapeDtypeStruct((batch_p, out_p), odt),
        grid_spec=pltpu.PrefetchScalarGridSpec(
            num_scalar_prefetch=0,
            grid=grid,
            in_specs=[
                pl.BlockSpec((tm, in_p), lambda i: (i, 0)),         # x: batch-tiled
                pl.BlockSpec((in_p, width_p), lambda i: (0, 0)),    # W1: resident
                pl.BlockSpec((1, width_p), lambda i: (0, 0)),       # b1: resident
                pl.BlockSpec((width_p, out_p), lambda i: (0, 0)),   # W2: resident
                pl.BlockSpec((1, out_p), lambda i: (0, 0)),         # b2: resident
            ],
            out_specs=pl.BlockSpec((tm, out_p), lambda i: (i, 0)),  # lane-dense store
        ),
        compiler_params=pltpu.CompilerParams(
            dimension_semantics=("parallel",),   # megacore sharding on v7x
            vmem_limit_bytes=vmem_limit,
        ),
        cost_estimate=cost,
    )(xp, w1p, b1p, w2p, b2p)

    # Slice away the padding (wrapper-side, cheap).
    return out_padded[:batch, :out_dim]


def init_linear_params(key, fan_in, fan_out, dtype=jnp.float32):
    # PyTorch nn.Linear default init: U(-1/sqrt(fan_in), 1/sqrt(fan_in)).
    kw, kb = jax.random.split(key)
    bound = 1.0 / jnp.sqrt(jnp.asarray(fan_in, dtype))
    # Stored already-transposed: [fan_in, fan_out].
    w = jax.random.uniform(kw, (fan_in, fan_out), dtype, -bound, bound)
    b = jax.random.uniform(kb, (1, fan_out), dtype, -bound, bound)
    return w, b


if __name__ == "__main__":
    # Small shapes consistent with the module's forward (sigma = tanh).
    batch, in_dim, width, out_dim = 8, 16, 32, 8

    key = jax.random.PRNGKey(0)
    kx, k1, k2 = jax.random.split(key, 3)

    x = jax.random.normal(kx, (batch, in_dim), jnp.float32)
    w1, b1 = init_linear_params(k1, in_dim, width)
    w2, b2 = init_linear_params(k2, width, out_dim)

    # Pure-JAX reference (same math as the PyTorch forward with sigma=tanh).
    ref = jnp.tanh(x @ w1 + b1) @ w2 + b2

    # f32 operand path: exact-tolerance check.
    out_f32 = jax.block_until_ready(
        shallow_nn(x, w1, b1, w2, b2, compute_dtype=jnp.float32))
    assert out_f32.shape == (batch, out_dim)
    assert jnp.allclose(out_f32, ref, atol=1e-5, rtol=1e-5), "f32 mismatch vs reference"

    # bf16 matmul operands, f32 accumulation (v5e/v6e/v7x MXU fast path):
    # looser tolerance due to bf16 input quantization.
    out_bf16 = jax.block_until_ready(
        shallow_nn(x, w1, b1, w2, b2, compute_dtype=jnp.bfloat16))
    assert out_bf16.shape == (batch, out_dim)
    assert jnp.allclose(out_bf16, ref, atol=3e-2, rtol=3e-2), "bf16 mismatch vs reference"

    print("KERNEL_OK")
</pallas_src>

<mosaic_0001>
module attributes {stable_mosaic.version = 11 : i64} {
  func.func @shallow_nn_kernel(%arg0: i32, %arg1: memref<8x128xf32, #tpu.memory_space<vmem>>, %arg2: memref<128x128xf32, #tpu.memory_space<vmem>>, %arg3: memref<1x128xf32, #tpu.memory_space<vmem>>, %arg4: memref<128x128xf32, #tpu.memory_space<vmem>>, %arg5: memref<1x128xf32, #tpu.memory_space<vmem>>, %arg6: memref<8x128xf32, #tpu.memory_space<vmem>>) attributes {dimension_semantics = [#tpu.dimension_semantics<parallel>], iteration_bounds = array<i64: 1>, scalar_prefetch = 0 : i64, scratch_operands = 0 : i64, tpu.core_type = #tpu.core_type<tc>, window_params = [{transform_indices = @transform_0, window_bounds = array<i64: 8, 128>}, {pipeline_mode = #tpu.pipeline_mode<synchronous>, transform_indices = @transform_1, window_bounds = array<i64: 128, 128>}, {pipeline_mode = #tpu.pipeline_mode<synchronous>, transform_indices = @transform_2, window_bounds = array<i64: 1, 128>}, {pipeline_mode = #tpu.pipeline_mode<synchronous>, transform_indices = @transform_3, window_bounds = array<i64: 128, 128>}, {pipeline_mode = #tpu.pipeline_mode<synchronous>, transform_indices = @transform_4, window_bounds = array<i64: 1, 128>}, {transform_indices = @transform_5, window_bounds = array<i64: 8, 128>}]} {
    %c0 = arith.constant 0 : index
    %c0_0 = arith.constant 0 : index
    %0 = vector.load %arg1[%c0, %c0_0] : memref<8x128xf32, #tpu.memory_space<vmem>>, vector<8x128xf32>
    %c0_1 = arith.constant 0 : index
    %c0_2 = arith.constant 0 : index
    %1 = vector.load %arg2[%c0_1, %c0_2] : memref<128x128xf32, #tpu.memory_space<vmem>>, vector<128x128xf32>
    %cst = arith.constant dense<0.000000e+00> : vector<8x128xf32>
    %2 = tpu.matmul %0, %1, %cst {dimension_numbers = #tpu.dot_dimension_numbers<[1], [0], [0], [1], [0, 0, 1, 1], [], []>} : vector<8x128xf32>, vector<128x128xf32>, vector<8x128xf32> -> vector<8x128xf32>
    %c0_3 = arith.constant 0 : index
    %c0_4 = arith.constant 0 : index
    %3 = vector.load %arg3[%c0_3, %c0_4] : memref<1x128xf32, #tpu.memory_space<vmem>>, vector<1x128xf32>
    %4 = vector.broadcast %3 : vector<1x128xf32> to vector<8x128xf32>
    %5 = arith.addf %2, %4 : vector<8x128xf32>
    %6 = math.tanh %5 : vector<8x128xf32>
    %c0_5 = arith.constant 0 : index
    %c0_6 = arith.constant 0 : index
    %7 = vector.load %arg4[%c0_5, %c0_6] : memref<128x128xf32, #tpu.memory_space<vmem>>, vector<128x128xf32>
    %cst_7 = arith.constant dense<0.000000e+00> : vector<8x128xf32>
    %8 = tpu.matmul %6, %7, %cst_7 {dimension_numbers = #tpu.dot_dimension_numbers<[1], [0], [0], [1], [0, 0, 1, 1], [], []>} : vector<8x128xf32>, vector<128x128xf32>, vector<8x128xf32> -> vector<8x128xf32>
    %c0_8 = arith.constant 0 : index
    %c0_9 = arith.constant 0 : index
    %9 = vector.load %arg5[%c0_8, %c0_9] : memref<1x128xf32, #tpu.memory_space<vmem>>, vector<1x128xf32>
    %10 = vector.broadcast %9 : vector<1x128xf32> to vector<8x128xf32>
    %11 = arith.addf %8, %10 : vector<8x128xf32>
    %c0_10 = arith.constant 0 : index
    %c0_11 = arith.constant 0 : index
    %12 = vector.load %arg6[%c0_10, %c0_11] : memref<8x128xf32, #tpu.memory_space<vmem>>, vector<8x128xf32>
    tpu.vector_store %arg6[%c0_10, %c0_11], %11 {strides = array<i32>} : memref<8x128xf32, #tpu.memory_space<vmem>>, vector<8x128xf32>,
    return
  }
  func.func @transform_0(%arg0: i32) -> (i32, i32) {
    %c0_i32 = arith.constant 0 : i32
    %c0_i32_0 = arith.constant 0 : i32
    return %arg0, %c0_i32 : i32, i32
  }
  func.func @transform_1(%arg0: i32) -> (i32, i32) {
    %c0_i32 = arith.constant 0 : i32
    %c0_i32_0 = arith.constant 0 : i32
    %c0_i32_1 = arith.constant 0 : i32
    return %c0_i32, %c0_i32_0 : i32, i32
  }
  func.func @transform_2(%arg0: i32) -> (i32, i32) {
    %c0_i32 = arith.constant 0 : i32
    %c0_i32_0 = arith.constant 0 : i32
    %c0_i32_1 = arith.constant 0 : i32
    return %c0_i32, %c0_i32_0 : i32, i32
  }
  func.func @transform_3(%arg0: i32) -> (i32, i32) {
    %c0_i32 = arith.constant 0 : i32
    %c0_i32_0 = arith.constant 0 : i32
    %c0_i32_1 = arith.constant 0 : i32
    return %c0_i32, %c0_i32_0 : i32, i32
  }
  func.func @transform_4(%arg0: i32) -> (i32, i32) {
    %c0_i32 = arith.constant 0 : i32
    %c0_i32_0 = arith.constant 0 : i32
    %c0_i32_1 = arith.constant 0 : i32
    return %c0_i32, %c0_i32_0 : i32, i32
  }
  func.func @transform_5(%arg0: i32) -> (i32, i32) {
    %c0_i32 = arith.constant 0 : i32
    %c0_i32_0 = arith.constant 0 : i32
    return %arg0, %c0_i32 : i32, i32
  }
}

</mosaic_0001>

<llo_original>
// kernel: shallow_nn.1
$region0: #{shallow_nn.1}
  #allocation0 [shape = 'u32[]', space=smem, size = 0x4, offset = 0x4, fixed_abs, tag = 'smem constant byte address 0x4 - core index']
  #allocation1 [shape = 'u32[144,128]{1,0:T(1,128)}', space=vmem, size = 0x12000, scoped, tag = 'internal scratch']
  %s0 = inlined_call_operand.vmem [shape: f32[8,128], index: 0, kind: input, shape index: {}]
  %s1 = inlined_call_operand.vmem [shape: f32[128,128], index: 1, kind: input, shape index: {}]
  %s2 = inlined_call_operand.vmem [shape: f32[1,128], index: 2, kind: input, shape index: {}]
  %s3 = inlined_call_operand.vmem [shape: f32[128,128], index: 3, kind: input, shape index: {}]
  %s4 = inlined_call_operand.vmem [shape: f32[1,128], index: 4, kind: input, shape index: {}]
  %s5 = inlined_call_operand.hbm [shape: f32[8,128], index: 5, kind: output, shape index: {}]
  %s6 = sld [smem:[#allocation0]]
  $region30: #{shallow_nn.1} parent=0
    _
  %s8 = ssub.s32 1, %s6
  %s9 = scalar_select 0, %s8, %s6
  $region1: #{shallow_nn.1} parent=0
    #allocation2 [shape = 'u8[4096]{0}', space=vmem, size = 0x1000, scoped, tag = 'output window, operand 0, single buffered']
    #allocation3 [shape = 's32[1]{0}', space=sflag, size = 0x4, scoped, tag = 'scoped memory for shallow_nn.1']
    %10 = vsyncpa [#allocation3], 0
    // Predicated region
    $region2: #{shallow_nn.1} parent=1 // pred_check
      _
    $region3: #{shallow_nn.1} parent=1 // pred_check_branch
      %12 = sbr.rel (0) target = $region5
    $region4: #{shallow_nn.1} parent=1 // pred_region
      _
    $region5: #{shallow_nn.1} parent=1 // pred_fallthru
      _
    // Predicated region
    $region6: #{shallow_nn.1} parent=1 // pred_check
      _
    $region7: #{shallow_nn.1} parent=1 // pred_check_branch
      %14 = sbr.rel (0) target = $region9
    $region8: #{shallow_nn.1} parent=1 // pred_region
      _
    $region9: #{shallow_nn.1} parent=1 // pred_fallthru
      _
    // Predicated region
    $region10: #{shallow_nn.1} parent=1 // pred_check
      _
    $region11: #{shallow_nn.1} parent=1 // pred_check_branch
      %16 = sbr.rel (0) target = $region13
    $region12: #{shallow_nn.1} parent=1 // pred_region
      _
    $region13: #{shallow_nn.1} parent=1 // pred_fallthru
      _
    // Predicated region
    $region14: #{shallow_nn.1} parent=1 // pred_check
      _
    $region15: #{shallow_nn.1} parent=1 // pred_check_branch
      %18 = sbr.rel (0) target = $region17
    $region16: #{shallow_nn.1} parent=1 // pred_region
      _
    $region17: #{shallow_nn.1} parent=1 // pred_fallthru
      _
    // Predicated region
    $region18: #{shallow_nn.1} parent=1 // pred_check
      _
    $region19: #{shallow_nn.1} parent=1 // pred_check_branch
      %20 = sbr.rel (0) target = $region21
    $region20: #{shallow_nn.1} parent=1 // pred_region
      _
    $region21: #{shallow_nn.1} parent=1 // pred_fallthru
      _
    %v21 = vld [vmem:[%s0] sm:$0xff]
    %v22 = vld [vmem:[%s1] sm:$0xff]
    %v23 = vld [vmem:[%s1 + $0x8] sm:$0xff]
    %v24 = vld [vmem:[%s1 + $0x10] sm:$0xff]
    %v25 = vld [vmem:[%s1 + $0x18] sm:$0xff]
    %v26 = vld [vmem:[%s1 + $0x20] sm:$0xff]
    %v27 = vld [vmem:[%s1 + $0x28] sm:$0xff]
    %v28 = vld [vmem:[%s1 + $0x30] sm:$0xff]
    %v29 = vld [vmem:[%s1 + $0x38] sm:$0xff]
    %v30 = vld [vmem:[%s1 + $0x40] sm:$0xff]
    %v31 = vld [vmem:[%s1 + $0x48] sm:$0xff]
    %v32 = vld [vmem:[%s1 + $0x50] sm:$0xff]
    %v33 = vld [vmem:[%s1 + $0x58] sm:$0xff]
    %v34 = vld [vmem:[%s1 + $0x60] sm:$0xff]
    %v35 = vld [vmem:[%s1 + $0x68] sm:$0xff]
    %v36 = vld [vmem:[%s1 + $0x70] sm:$0xff]
    %v37 = vld [vmem:[%s1 + $0x78] sm:$0xff]
    %v38 = vld [vmem:[%s2] sm:$0x1]
    %v40 = vlaneseq
    %v41 = vshrl.u32 %v40, 7
    %v42 = vsub.s32 0, %v41
    %v43 = vrot.slane %v38, %v42
    %45 = vmatprep.subr.mxu0 0.0
    %46 = vmatpush1.msra.mxu0 %v37
    %47 = vmatprep.subr.mxu0 0.0
    %48 = vmatpush1.msra.mxu0 %v36
    %49 = vmatprep.subr.mxu0 0.0
    %50 = vmatpush1.msra.mxu0 %v35
    %51 = vmatprep.subr.mxu0 0.0
    %52 = vmatpush1.msra.mxu0 %v34
    %53 = vmatprep.subr.mxu0 0.0
    %54 = vmatpush1.msra.mxu0 %v33
    %55 = vmatprep.subr.mxu0 0.0
    %56 = vmatpush1.msra.mxu0 %v32
    %57 = vmatprep.subr.mxu0 0.0
    %58 = vmatpush1.msra.mxu0 %v31
    %59 = vmatprep.subr.mxu0 0.0
    %60 = vmatpush1.msra.mxu0 %v30
    %61 = vmatprep.subr.mxu0 0.0
    %62 = vmatpush1.msra.mxu0 %v29
    %63 = vmatprep.subr.mxu0 0.0
    %64 = vmatpush1.msra.mxu0 %v28
    %65 = vmatprep.subr.mxu0 0.0
    %66 = vmatpush1.msra.mxu0 %v27
    %67 = vmatprep.subr.mxu0 0.0
    %68 = vmatpush1.msra.mxu0 %v26
    %69 = vmatprep.subr.mxu0 0.0
    %70 = vmatpush1.msra.mxu0 %v25
    %71 = vmatprep.subr.mxu0 0.0
    %72 = vmatpush1.msra.mxu0 %v24
    %73 = vmatprep.subr.mxu0 0.0
    %74 = vmatpush1.msra.mxu0 %v23
    %75 = vmatprep.subr.mxu0 0.0
    %76 = vmatpush1.msra.mxu0 %v22
    %77 = vmatprep.subr.mxu0 0.0
    %78 = vmatpush2.msra.mxu0 0.0
    %79 = vmatprep.subr.mxu0 0.0
    %80 = vmatpush2.msra.mxu0 0.0
    %81 = vmatprep.subr.mxu0 0.0
    %82 = vmatpush2.msra.mxu0 0.0
    %83 = vmatprep.subr.mxu0 0.0
    %84 = vmatpush2.msra.mxu0 0.0
    %85 = vmatprep.subr.mxu0 0.0
    %86 = vmatpush2.msra.mxu0 0.0
    %87 = vmatprep.subr.mxu0 0.0
    %88 = vmatpush2.msra.mxu0 0.0
    %89 = vmatprep.subr.mxu0 0.0
    %90 = vmatpush2.msra.mxu0 0.0
    %91 = vmatprep.subr.mxu0 0.0
    %92 = vmatpush2.msra.mxu0 0.0
    %93 = vmatprep.subr.mxu0 0.0
    %94 = vmatpush2.msra.mxu0 0.0
    %95 = vmatprep.subr.mxu0 0.0
    %96 = vmatpush2.msra.mxu0 0.0
    %97 = vmatprep.subr.mxu0 0.0
    %98 = vmatpush2.msra.mxu0 0.0
    %99 = vmatprep.subr.mxu0 0.0
    %100 = vmatpush2.msra.mxu0 0.0
    %101 = vmatprep.subr.mxu0 0.0
    %102 = vmatpush2.msra.mxu0 0.0
    %103 = vmatprep.subr.mxu0 0.0
    %104 = vmatpush2.msra.mxu0 0.0
    %105 = vmatprep.subr.mxu0 0.0
    %106 = vmatpush2.msra.mxu0 0.0
    %107 = vmatprep.subr.mxu0 0.0
    %108 = vmatpush2.msra.mxu0 0.0
    %109 = vmatprep.mubr.f32.mxu0 0.0
    %110 = vmatmul.mubr.f32.gmra.mxu0 %v21
    %v111 = vpop.f32.mrf.mxu0
    %v112 = vadd.f32 %v43, %v111
    %v113 = vpop.f32.mrf.mxu0
    %114 = vdwg.mxu0
    %v115 = vtanh.pop %v112
    %v116 = vld [vmem:[%s3] sm:$0xff]
    %v117 = vld [vmem:[%s3 + $0x8] sm:$0xff]
    %v118 = vld [vmem:[%s3 + $0x10] sm:$0xff]
    %v119 = vld [vmem:[%s3 + $0x18] sm:$0xff]
    %v120 = vld [vmem:[%s3 + $0x20] sm:$0xff]
    %v121 = vld [vmem:[%s3 + $0x28] sm:$0xff]
    %v122 = vld [vmem:[%s3 + $0x30] sm:$0xff]
    %v123 = vld [vmem:[%s3 + $0x38] sm:$0xff]
    %v124 = vld [vmem:[%s3 + $0x40] sm:$0xff]
    %v125 = vld [vmem:[%s3 + $0x48] sm:$0xff]
    %v126 = vld [vmem:[%s3 + $0x50] sm:$0xff]
    %v127 = vld [vmem:[%s3 + $0x58] sm:$0xff]
    %v128 = vld [vmem:[%s3 + $0x60] sm:$0xff]
    %v129 = vld [vmem:[%s3 + $0x68] sm:$0xff]
    %v130 = vld [vmem:[%s3 + $0x70] sm:$0xff]
    %v131 = vld [vmem:[%s3 + $0x78] sm:$0xff]
    %v132 = vld [vmem:[%s4] sm:$0x1]
    %v134 = vlaneseq
    %v135 = vshrl.u32 %v134, 7
    %v136 = vsub.s32 0, %v135
    %v137 = vrot.slane %v132, %v136
    %139 = vmatprep.subr.mxu0 0.0
    %140 = vmatpush1.msra.mxu0 %v131
    %141 = vmatprep.subr.mxu0 0.0
    %142 = vmatpush1.msra.mxu0 %v130
    %143 = vmatprep.subr.mxu0 0.0
    %144 = vmatpush1.msra.mxu0 %v129
    %145 = vmatprep.subr.mxu0 0.0
    %146 = vmatpush1.msra.mxu0 %v128
    %147 = vmatprep.subr.mxu0 0.0
    %148 = vmatpush1.msra.mxu0 %v127
    %149 = vmatprep.subr.mxu0 0.0
    %150 = vmatpush1.msra.mxu0 %v126
    %151 = vmatprep.subr.mxu0 0.0
    %152 = vmatpush1.msra.mxu0 %v125
    %153 = vmatprep.subr.mxu0 0.0
    %154 = vmatpush1.msra.mxu0 %v124
    %155 = vmatprep.subr.mxu0 0.0
    %156 = vmatpush1.msra.mxu0 %v123
    %157 = vmatprep.subr.mxu0 0.0
    %158 = vmatpush1.msra.mxu0 %v122
    %159 = vmatprep.subr.mxu0 0.0
    %160 = vmatpush1.msra.mxu0 %v121
    %161 = vmatprep.subr.mxu0 0.0
    %162 = vmatpush1.msra.mxu0 %v120
    %163 = vmatprep.subr.mxu0 0.0
    %164 = vmatpush1.msra.mxu0 %v119
    %165 = vmatprep.subr.mxu0 0.0
    %166 = vmatpush1.msra.mxu0 %v118
    %167 = vmatprep.subr.mxu0 0.0
    %168 = vmatpush1.msra.mxu0 %v117
    %169 = vmatprep.subr.mxu0 0.0
    %170 = vmatpush1.msra.mxu0 %v116
    %171 = vmatprep.subr.mxu0 0.0
    %172 = vmatpush2.msra.mxu0 0.0
    %173 = vmatprep.subr.mxu0 0.0
    %174 = vmatpush2.msra.mxu0 0.0
    %175 = vmatprep.subr.mxu0 0.0
    %176 = vmatpush2.msra.mxu0 0.0
    %177 = vmatprep.subr.mxu0 0.0
    %178 = vmatpush2.msra.mxu0 0.0
    %179 = vmatprep.subr.mxu0 0.0
    %180 = vmatpush2.msra.mxu0 0.0
    %181 = vmatprep.subr.mxu0 0.0
    %182 = vmatpush2.msra.mxu0 0.0
    %183 = vmatprep.subr.mxu0 0.0
    %184 = vmatpush2.msra.mxu0 0.0
    %185 = vmatprep.subr.mxu0 0.0
    %186 = vmatpush2.msra.mxu0 0.0
    %187 = vmatprep.subr.mxu0 0.0
    %188 = vmatpush2.msra.mxu0 0.0
    %189 = vmatprep.subr.mxu0 0.0
    %190 = vmatpush2.msra.mxu0 0.0
    %191 = vmatprep.subr.mxu0 0.0
    %192 = vmatpush2.msra.mxu0 0.0
    %193 = vmatprep.subr.mxu0 0.0
    %194 = vmatpush2.msra.mxu0 0.0
    %195 = vmatprep.subr.mxu0 0.0
    %196 = vmatpush2.msra.mxu0 0.0
    %197 = vmatprep.subr.mxu0 0.0
    %198 = vmatpush2.msra.mxu0 0.0
    %199 = vmatprep.subr.mxu0 0.0
    %200 = vmatpush2.msra.mxu0 0.0
    %201 = vmatprep.subr.mxu0 0.0
    %202 = vmatpush2.msra.mxu0 0.0
    %203 = vmatprep.mubr.f32.mxu0 0.0
    %204 = vmatmul.mubr.f32.gmra.mxu0 %v115
    %v205 = vpop.f32.mrf.mxu0
    %v206 = vadd.f32 %v137, %v205
    %v207 = vpop.f32.mrf.mxu0
    %208 = vdwg.mxu0
    %209 = vst [vmem:[#allocation2] sm:$0xff] %v206
    // Predicated region
    $region22: #{shallow_nn.1} parent=1 // pred_check
      _
    $region23: #{shallow_nn.1} parent=1 // pred_check_branch
      %211 = sbr.rel (0) target = $region25
    $region24: #{shallow_nn.1} parent=1 // pred_region
      %s213 = ssub.s32 128, 128
      %214 = vsyncadd [#allocation3], %s213
      %s216 = sshll.u32 [#allocation2], 4
      %s217 = int_to_ptr.vmem [resolvable:$true] %s216
      %219 = dma.vmem_to_hbm [thread:$0]  %s217, 128, %s5, [#allocation3]
    $region25: #{shallow_nn.1} parent=1 // pred_fallthru
      _
    // Predicated region
    $region26: #{shallow_nn.1} parent=1 // pred_check
      _
    $region27: #{shallow_nn.1} parent=1 // pred_check_branch
      %221 = sbr.rel (0) target = $region29
    $region28: #{shallow_nn.1} parent=1 // pred_region
      %222 = dma.done [#allocation3], 128
    $region29: #{shallow_nn.1} parent=1 // pred_fallthru
      _
    %223 = vsyncpa [#allocation3], 1

</llo_original>
